<compile_context>
chip_gen: v7x
topology: tpu7x:2x2x1
jax: 0.10.0
libtpu: 0.0.40
codegen_flags: <defaults>
</compile_context>

<pallas_src>
import functools

import jax
import jax.numpy as jnp
import numpy as np
from jax import lax
from jax.experimental import pallas as pl
from jax.experimental.pallas import tpu as pltpu


def _dice_loss_kernel(pred_ref, true_ref, out_ref,
                      flag_acc, inter_raw, inter_sig,
                      psum_raw, psum_sig, tsum,
                      *, smooth, valid_tail, num_classes):
    s = pl.program_id(0)
    last = pl.num_programs(0) - 1

    @pl.when(s == 0)
    def _init():
        flag_acc[...] = jnp.zeros_like(flag_acc)
        inter_raw[...] = jnp.zeros_like(inter_raw)
        inter_sig[...] = jnp.zeros_like(inter_sig)
        psum_raw[...] = jnp.zeros_like(psum_raw)
        psum_sig[...] = jnp.zeros_like(psum_sig)
        tsum[...] = jnp.zeros_like(tsum)

    pred = pred_ref[...].astype(jnp.float32)   # (R, chunk), cast in-kernel
    true = true_ref[...].astype(jnp.float32)   # (R, chunk)
    sig = jax.nn.sigmoid(pred)                 # EUP slot, effectively free

    def accumulate(pm, sm, tm):
        # One lane-reduction per statistic; accumulators are tiny (R, 1) f32.
        inter_raw[...] += jnp.sum(pm * tm, axis=-1, keepdims=True)
        inter_sig[...] += jnp.sum(sm * tm, axis=-1, keepdims=True)
        psum_raw[...] += jnp.sum(pm, axis=-1, keepdims=True)
        psum_sig[...] += jnp.sum(sm, axis=-1, keepdims=True)
        tsum[...] += jnp.sum(tm, axis=-1, keepdims=True)
        # Out-of-range flag: >0 iff any valid element has p<0 or p>1.
        # (For masked lanes pm==0 -> max(-0, -1) = 0, which never triggers.)
        oor = jnp.maximum(-pm, pm - 1.0)
        flag_acc[...] = jnp.maximum(flag_acc[...],
                                    jnp.max(oor, axis=-1, keepdims=True))

    if valid_tail is None:
        # S divides the spatial tile exactly: no masking anywhere.
        accumulate(pred, sig, true)
    else:
        @pl.when(s != last)
        def _steady():
            accumulate(pred, sig, true)

        @pl.when(s == last)
        def _tail():
            # Partial last tile: mask out-of-bounds lanes.  sigmoid(pad)=0.5,
            # so the sigmoid stream must be zeroed explicitly as well.
            lane = lax.broadcasted_iota(jnp.int32, pred.shape, 1)
            mask = lane < valid_tail
            accumulate(jnp.where(mask, pred, 0.0),
                       jnp.where(mask, sig, 0.0),
                       jnp.where(mask, true, 0.0))

    @pl.when(s == last)
    def _finalize():
        # Global "needs sigmoid?" decision over the whole y_pred tensor.
        use_sig = jnp.max(flag_acc[...]) > 0.0

        inter = jnp.where(use_sig, inter_sig[...], inter_raw[...])   # (R, 1)
        ps = jnp.where(use_sig, psum_sig[...], psum_raw[...])        # (R, 1)
        ts = tsum[...]                                               # (R, 1)

        row = lax.broadcasted_iota(jnp.int32, ts.shape, 0)
        class_idx = row % num_classes
        # The PyTorch loop skips class 0 and only keeps entries with mass.
        valid = jnp.logical_and(class_idx >= 1,
                                jnp.logical_or(ts > 0.0, ps > 0.0))
        dice = (2.0 * inter + smooth) / (ps + ts + smooth)
        loss = jnp.where(valid, 1.0 - dice, 0.0)
        cnt = jnp.sum(valid.astype(jnp.float32))
        tot = jnp.sum(loss)
        # Mean over selected losses; 0.0 if none were selected.
        out_ref[0, 0] = jnp.where(cnt > 0.0, tot / jnp.maximum(cnt, 1.0), 0.0)


def brats_dice_loss(y_pred, y_true, smooth=1.0,
                    max_chunk=32768, vmem_budget_bytes=24 * 1024 * 1024):
    """Pallas TPU implementation of BraTSDiceLoss.forward (returns scalar f32)."""
    B, C = y_pred.shape[0], y_pred.shape[1]
    S = int(np.prod(y_pred.shape[2:]))
    R = B * C

    # Metadata-only reshapes; inputs keep their native dtypes (cast in-kernel).
    pred = y_pred.reshape(R, S)
    true = y_true.reshape(R, S)
    bp = pred.dtype.itemsize
    bt = true.dtype.itemsize

    # Spatial tile: lane-aligned, as large as the VMEM budget for the two
    # double-buffered input streams allows (amortizes ~0.35us/step pipeline
    # overhead), capped at max_chunk lanes.
    bytes_per_lane = 2 * R * (bp + bt)            # 2-deep buffers, both inputs
    budget_chunk = max(128, (vmem_budget_bytes // bytes_per_lane) // 128 * 128)
    chunk = min(int(max_chunk), budget_chunk, int(pl.cdiv(S, 128)) * 128)
    grid = (int(pl.cdiv(S, chunk)),)
    rem = S % chunk
    valid_tail = None if rem == 0 else rem

    # Scoped-VMEM request: input double-buffers + headroom for Mosaic's
    # strip-mined elementwise/reduce temporaries.  Clamped to [16, 48] MiB so
    # it raises v5e's 16 MiB default scope when needed but still leaves
    # double-buffer headroom inside v7x's 64 MiB physical VMEM.
    vmem_bytes = 2 * R * chunk * (bp + bt) + 8 * R * chunk * 4 + (1 << 20)
    vmem_bytes = int(min(max(vmem_bytes, 16 * 1024 * 1024), 48 * 1024 * 1024))

    cost = pl.CostEstimate(
        flops=8 * R * S,
        transcendentals=R * S,                    # sigmoid
        bytes_accessed=R * S * (bp + bt) + 4)

    # TODO(synk): on v7x, split the spatial grid across the 2 TensorCores
    # (leading parallel axis with per-core partial stats + tiny combine, or two
    # pallas_calls on S halves) for ~2x on large S; no benefit on v5e/v6e.
    out = pl.pallas_call(
        functools.partial(_dice_loss_kernel, smooth=float(smooth),
                          valid_tail=valid_tail, num_classes=C),
        out_shape=jax.ShapeDtypeStruct((1, 1), jnp.float32),
        grid_spec=pltpu.PrefetchScalarGridSpec(
            num_scalar_prefetch=0,
            grid=grid,
            in_specs=[
                pl.BlockSpec((R, chunk), lambda s: (0, s)),
                pl.BlockSpec((R, chunk), lambda s: (0, s)),
            ],
            out_specs=pl.BlockSpec(memory_space=pltpu.MemorySpace.SMEM),
            scratch_shapes=[pltpu.VMEM((R, 1), jnp.float32)] * 6,
        ),
        compiler_params=pltpu.CompilerParams(
            dimension_semantics=("arbitrary",),
            vmem_limit_bytes=vmem_bytes),
        cost_estimate=cost,
    )(pred, true)
    return out[0, 0]


def _reference_loss(y_pred, y_true, smooth=1.0):
    """Pure-JAX reference mirroring the PyTorch forward."""
    use_sig = jnp.logical_or(jnp.min(y_pred) < 0.0, jnp.max(y_pred) > 1.0)
    probs = jnp.where(use_sig, jax.nn.sigmoid(y_pred), y_pred)
    B, C = y_pred.shape[:2]
    p = probs.reshape(B, C, -1).astype(jnp.float32)
    t = y_true.reshape(B, C, -1).astype(jnp.float32)
    inter = jnp.sum(p * t, -1)
    ps = jnp.sum(p, -1)
    ts = jnp.sum(t, -1)
    class_idx = jnp.broadcast_to(jnp.arange(C)[None, :], (B, C))
    valid = (class_idx >= 1) & ((ts > 0.0) | (ps > 0.0))
    dice = (2.0 * inter + smooth) / (ps + ts + smooth)
    loss = jnp.where(valid, 1.0 - dice, 0.0)
    cnt = jnp.sum(valid.astype(jnp.float32))
    return jnp.where(cnt > 0.0, jnp.sum(loss) / jnp.maximum(cnt, 1.0), 0.0)


if __name__ == "__main__":
    key = jax.random.PRNGKey(0)
    k1, k2, k3, k4 = jax.random.split(key, 4)

    # Primary case: logits (negatives) -> sigmoid branch; binary masks shipped
    # as bf16 to cut HBM traffic (the kernel casts to f32 on-chip).
    B, C, H, W = 2, 4, 16, 16
    y_pred = jax.random.normal(k1, (B, C, H, W), dtype=jnp.float32)
    y_true = (jax.random.uniform(k2, (B, C, H, W)) > 0.5).astype(jnp.bfloat16)

    loss = jax.block_until_ready(brats_dice_loss(y_pred, y_true, smooth=1.0))
    ref = jax.block_until_ready(_reference_loss(y_pred, y_true, smooth=1.0))
    np.testing.assert_allclose(np.asarray(loss), np.asarray(ref),
                               rtol=1e-5, atol=1e-6)

    # Secondary case: multi-step grid with a partial tail tile (exercises the
    # unmasked steady-state path + the masked last tile), f32 masks.
    y_pred2 = jax.random.normal(k3, (2, 4, 20, 20), dtype=jnp.float32)
    y_true2 = (jax.random.uniform(k4, (2, 4, 20, 20)) > 0.5).astype(jnp.float32)
    loss2 = jax.block_until_ready(
        brats_dice_loss(y_pred2, y_true2, smooth=1.0, max_chunk=128))
    ref2 = jax.block_until_ready(_reference_loss(y_pred2, y_true2, smooth=1.0))
    np.testing.assert_allclose(np.asarray(loss2), np.asarray(ref2),
                               rtol=1e-5, atol=1e-6)

    # Third case: predictions already in [0, 1] -> no-sigmoid branch.
    y_pred3 = jax.random.uniform(k3, (B, C, H, W), dtype=jnp.float32)
    loss3 = jax.block_until_ready(brats_dice_loss(y_pred3, y_true, smooth=1.0))
    ref3 = jax.block_until_ready(_reference_loss(y_pred3, y_true, smooth=1.0))
    np.testing.assert_allclose(np.asarray(loss3), np.asarray(ref3),
                               rtol=1e-5, atol=1e-6)

    print("KERNEL_OK")
</pallas_src>

<mosaic_0001>
module attributes {stable_mosaic.version = 11 : i64} {
  func.func @_dice_loss_kernel(%arg0: i32, %arg1: memref<8x256xf32, #tpu.memory_space<vmem>>, %arg2: memref<8x256xbf16, #tpu.memory_space<vmem>>, %arg3: memref<1x1xf32, #tpu.memory_space<smem>>, %arg4: memref<8x1xf32, #tpu.memory_space<vmem>>, %arg5: memref<8x1xf32, #tpu.memory_space<vmem>>, %arg6: memref<8x1xf32, #tpu.memory_space<vmem>>, %arg7: memref<8x1xf32, #tpu.memory_space<vmem>>, %arg8: memref<8x1xf32, #tpu.memory_space<vmem>>, %arg9: memref<8x1xf32, #tpu.memory_space<vmem>>) attributes {dimension_semantics = [#tpu.dimension_semantics<arbitrary>], iteration_bounds = array<i64: 1>, scalar_prefetch = 0 : i64, scratch_operands = 6 : i64, tpu.core_type = #tpu.core_type<tc>, window_params = [{transform_indices = @transform_0, window_bounds = array<i64: 8, 256>}, {transform_indices = @transform_1, window_bounds = array<i64: 8, 256>}, {transform_indices = @transform_2, window_bounds = array<i64: 1, 1>}]} {
    %c0_i32 = arith.constant 0 : i32
    %0 = arith.cmpi eq, %arg0, %c0_i32 : i32
    %1 = arith.extui %0 : i1 to i32
    %c0_i32_0 = arith.constant 0 : i32
    %2 = arith.cmpi ne, %1, %c0_i32_0 : i32
    scf.if %2 {
      %cst_38 = arith.constant 0.000000e+00 : f32
      %51 = vector.broadcast %cst_38 : f32 to vector<8x1xf32>
      %c0_39 = arith.constant 0 : index
      %c0_40 = arith.constant 0 : index
      %52 = vector.load %arg4[%c0_39, %c0_40] : memref<8x1xf32, #tpu.memory_space<vmem>>, vector<8x1xf32>
      tpu.vector_store %arg4[%c0_39, %c0_40], %51 {strides = array<i32>} : memref<8x1xf32, #tpu.memory_space<vmem>>, vector<8x1xf32>,
      %cst_41 = arith.constant 0.000000e+00 : f32
      %53 = vector.broadcast %cst_41 : f32 to vector<8x1xf32>
      %c0_42 = arith.constant 0 : index
      %c0_43 = arith.constant 0 : index
      %54 = vector.load %arg5[%c0_42, %c0_43] : memref<8x1xf32, #tpu.memory_space<vmem>>, vector<8x1xf32>
      tpu.vector_store %arg5[%c0_42, %c0_43], %53 {strides = array<i32>} : memref<8x1xf32, #tpu.memory_space<vmem>>, vector<8x1xf32>,
      %cst_44 = arith.constant 0.000000e+00 : f32
      %55 = vector.broadcast %cst_44 : f32 to vector<8x1xf32>
      %c0_45 = arith.constant 0 : index
      %c0_46 = arith.constant 0 : index
      %56 = vector.load %arg6[%c0_45, %c0_46] : memref<8x1xf32, #tpu.memory_space<vmem>>, vector<8x1xf32>
      tpu.vector_store %arg6[%c0_45, %c0_46], %55 {strides = array<i32>} : memref<8x1xf32, #tpu.memory_space<vmem>>, vector<8x1xf32>,
      %cst_47 = arith.constant 0.000000e+00 : f32
      %57 = vector.broadcast %cst_47 : f32 to vector<8x1xf32>
      %c0_48 = arith.constant 0 : index
      %c0_49 = arith.constant 0 : index
      %58 = vector.load %arg7[%c0_48, %c0_49] : memref<8x1xf32, #tpu.memory_space<vmem>>, vector<8x1xf32>
      tpu.vector_store %arg7[%c0_48, %c0_49], %57 {strides = array<i32>} : memref<8x1xf32, #tpu.memory_space<vmem>>, vector<8x1xf32>,
      %cst_50 = arith.constant 0.000000e+00 : f32
      %59 = vector.broadcast %cst_50 : f32 to vector<8x1xf32>
      %c0_51 = arith.constant 0 : index
      %c0_52 = arith.constant 0 : index
      %60 = vector.load %arg8[%c0_51, %c0_52] : memref<8x1xf32, #tpu.memory_space<vmem>>, vector<8x1xf32>
      tpu.vector_store %arg8[%c0_51, %c0_52], %59 {strides = array<i32>} : memref<8x1xf32, #tpu.memory_space<vmem>>, vector<8x1xf32>,
      %cst_53 = arith.constant 0.000000e+00 : f32
      %61 = vector.broadcast %cst_53 : f32 to vector<8x1xf32>
      %c0_54 = arith.constant 0 : index
      %c0_55 = arith.constant 0 : index
      %62 = vector.load %arg9[%c0_54, %c0_55] : memref<8x1xf32, #tpu.memory_space<vmem>>, vector<8x1xf32>
      tpu.vector_store %arg9[%c0_54, %c0_55], %61 {strides = array<i32>} : memref<8x1xf32, #tpu.memory_space<vmem>>, vector<8x1xf32>,
    } else {
    }
    %c0 = arith.constant 0 : index
    %c0_1 = arith.constant 0 : index
    %3 = vector.load %arg1[%c0, %c0_1] : memref<8x256xf32, #tpu.memory_space<vmem>>, vector<8x256xf32>
    %c0_2 = arith.constant 0 : index
    %c0_3 = arith.constant 0 : index
    %4 = vector.load %arg2[%c0_2, %c0_3] : memref<8x256xbf16, #tpu.memory_space<vmem>>, vector<8x256xbf16>
    %5 = arith.extf %4 : vector<8x256xbf16> to vector<8x256xf32>
    %6 = arith.negf %3 : vector<8x256xf32>
    %7 = math.exp %6 : vector<8x256xf32>
    %cst = arith.constant 1.000000e+00 : f32
    %8 = vector.broadcast %cst : f32 to vector<8x256xf32>
    %9 = arith.addf %8, %7 : vector<8x256xf32>
    %10 = arith.divf %8, %9 : vector<8x256xf32>
    %c0_4 = arith.constant 0 : index
    %c0_5 = arith.constant 0 : index
    %11 = vector.load %arg5[%c0_4, %c0_5] : memref<8x1xf32, #tpu.memory_space<vmem>>, vector<8x1xf32>
    %12 = arith.mulf %3, %5 : vector<8x256xf32>
    %cst_6 = arith.constant dense<0.000000e+00> : vector<8xf32>
    %13 = vector.multi_reduction <add>, %12, %cst_6 [1] : vector<8x256xf32> to vector<8xf32>
    %14 = vector.shape_cast %13 : vector<8xf32> to vector<8x1xf32>
    %15 = arith.addf %11, %14 : vector<8x1xf32>
    %c0_7 = arith.constant 0 : index
    %c0_8 = arith.constant 0 : index
    %16 = vector.load %arg5[%c0_7, %c0_8] : memref<8x1xf32, #tpu.memory_space<vmem>>, vector<8x1xf32>
    tpu.vector_store %arg5[%c0_7, %c0_8], %15 {strides = array<i32>} : memref<8x1xf32, #tpu.memory_space<vmem>>, vector<8x1xf32>,
    %c0_9 = arith.constant 0 : index
    %c0_10 = arith.constant 0 : index
    %17 = vector.load %arg6[%c0_9, %c0_10] : memref<8x1xf32, #tpu.memory_space<vmem>>, vector<8x1xf32>
    %18 = arith.mulf %10, %5 : vector<8x256xf32>
    %cst_11 = arith.constant dense<0.000000e+00> : vector<8xf32>
    %19 = vector.multi_reduction <add>, %18, %cst_11 [1] : vector<8x256xf32> to vector<8xf32>
    %20 = vector.shape_cast %19 : vector<8xf32> to vector<8x1xf32>
    %21 = arith.addf %17, %20 : vector<8x1xf32>
    %c0_12 = arith.constant 0 : index
    %c0_13 = arith.constant 0 : index
    %22 = vector.load %arg6[%c0_12, %c0_13] : memref<8x1xf32, #tpu.memory_space<vmem>>, vector<8x1xf32>
    tpu.vector_store %arg6[%c0_12, %c0_13], %21 {strides = array<i32>} : memref<8x1xf32, #tpu.memory_space<vmem>>, vector<8x1xf32>,
    %c0_14 = arith.constant 0 : index
    %c0_15 = arith.constant 0 : index
    %23 = vector.load %arg7[%c0_14, %c0_15] : memref<8x1xf32, #tpu.memory_space<vmem>>, vector<8x1xf32>
    %cst_16 = arith.constant dense<0.000000e+00> : vector<8xf32>
    %24 = vector.multi_reduction <add>, %3, %cst_16 [1] : vector<8x256xf32> to vector<8xf32>
    %25 = vector.shape_cast %24 : vector<8xf32> to vector<8x1xf32>
    %26 = arith.addf %23, %25 : vector<8x1xf32>
    %c0_17 = arith.constant 0 : index
    %c0_18 = arith.constant 0 : index
    %27 = vector.load %arg7[%c0_17, %c0_18] : memref<8x1xf32, #tpu.memory_space<vmem>>, vector<8x1xf32>
    tpu.vector_store %arg7[%c0_17, %c0_18], %26 {strides = array<i32>} : memref<8x1xf32, #tpu.memory_space<vmem>>, vector<8x1xf32>,
    %c0_19 = arith.constant 0 : index
    %c0_20 = arith.constant 0 : index
    %28 = vector.load %arg8[%c0_19, %c0_20] : memref<8x1xf32, #tpu.memory_space<vmem>>, vector<8x1xf32>
    %cst_21 = arith.constant dense<0.000000e+00> : vector<8xf32>
    %29 = vector.multi_reduction <add>, %10, %cst_21 [1] : vector<8x256xf32> to vector<8xf32>
    %30 = vector.shape_cast %29 : vector<8xf32> to vector<8x1xf32>
    %31 = arith.addf %28, %30 : vector<8x1xf32>
    %c0_22 = arith.constant 0 : index
    %c0_23 = arith.constant 0 : index
    %32 = vector.load %arg8[%c0_22, %c0_23] : memref<8x1xf32, #tpu.memory_space<vmem>>, vector<8x1xf32>
    tpu.vector_store %arg8[%c0_22, %c0_23], %31 {strides = array<i32>} : memref<8x1xf32, #tpu.memory_space<vmem>>, vector<8x1xf32>,
    %c0_24 = arith.constant 0 : index
    %c0_25 = arith.constant 0 : index
    %33 = vector.load %arg9[%c0_24, %c0_25] : memref<8x1xf32, #tpu.memory_space<vmem>>, vector<8x1xf32>
    %cst_26 = arith.constant dense<0.000000e+00> : vector<8xf32>
    %34 = vector.multi_reduction <add>, %5, %cst_26 [1] : vector<8x256xf32> to vector<8xf32>
    %35 = vector.shape_cast %34 : vector<8xf32> to vector<8x1xf32>
    %36 = arith.addf %33, %35 : vector<8x1xf32>
    %c0_27 = arith.constant 0 : index
    %c0_28 = arith.constant 0 : index
    %37 = vector.load %arg9[%c0_27, %c0_28] : memref<8x1xf32, #tpu.memory_space<vmem>>, vector<8x1xf32>
    tpu.vector_store %arg9[%c0_27, %c0_28], %36 {strides = array<i32>} : memref<8x1xf32, #tpu.memory_space<vmem>>, vector<8x1xf32>,
    %cst_29 = arith.constant 0.000000e+00 : f32
    %38 = vector.broadcast %cst_29 : f32 to vector<8x256xf32>
    %39 = arith.subf %38, %3 : vector<8x256xf32>
    %cst_30 = arith.constant 1.000000e+00 : f32
    %40 = vector.broadcast %cst_30 : f32 to vector<8x256xf32>
    %41 = arith.subf %3, %40 : vector<8x256xf32>
    %42 = arith.maximumf %39, %41 : vector<8x256xf32>
    %c0_31 = arith.constant 0 : index
    %c0_32 = arith.constant 0 : index
    %43 = vector.load %arg4[%c0_31, %c0_32] : memref<8x1xf32, #tpu.memory_space<vmem>>, vector<8x1xf32>
    %cst_33 = arith.constant dense<0xFF800000> : vector<8xf32>
    %44 = vector.multi_reduction <maximumf>, %42, %cst_33 [1] : vector<8x256xf32> to vector<8xf32>
    %45 = vector.shape_cast %44 : vector<8xf32> to vector<8x1xf32>
    %46 = arith.maximumf %43, %45 : vector<8x1xf32>
    %c0_34 = arith.constant 0 : index
    %c0_35 = arith.constant 0 : index
    %47 = vector.load %arg4[%c0_34, %c0_35] : memref<8x1xf32, #tpu.memory_space<vmem>>, vector<8x1xf32>
    tpu.vector_store %arg4[%c0_34, %c0_35], %46 {strides = array<i32>} : memref<8x1xf32, #tpu.memory_space<vmem>>, vector<8x1xf32>,
    %c0_i32_36 = arith.constant 0 : i32
    %48 = arith.cmpi eq, %arg0, %c0_i32_36 : i32
    %49 = arith.extui %48 : i1 to i32
    %c0_i32_37 = arith.constant 0 : i32
    %50 = arith.cmpi ne, %49, %c0_i32_37 : i32
    scf.if %50 {
      %c0_38 = arith.constant 0 : index
      %c0_39 = arith.constant 0 : index
      %51 = vector.load %arg4[%c0_38, %c0_39] : memref<8x1xf32, #tpu.memory_space<vmem>>, vector<8x1xf32>
      %52 = vector.shape_cast %51 : vector<8x1xf32> to vector<1x8x1xf32>
      %cst_40 = arith.constant dense<0xFF800000> : vector<1xf32>
      %53 = vector.multi_reduction <maximumf>, %52, %cst_40 [1, 2] : vector<1x8x1xf32> to vector<1xf32>
      %54 = vector.shape_cast %53 : vector<1xf32> to vector<1x1x1xf32>
      %55 = vector.extract %54[0, 0, 0] : f32 from vector<1x1x1xf32>
      %cst_41 = arith.constant 0.000000e+00 : f32
      %56 = arith.cmpf ogt, %55, %cst_41 : f32
      %c0_42 = arith.constant 0 : index
      %c0_43 = arith.constant 0 : index
      %57 = vector.load %arg6[%c0_42, %c0_43] : memref<8x1xf32, #tpu.memory_space<vmem>>, vector<8x1xf32>
      %c0_44 = arith.constant 0 : index
      %c0_45 = arith.constant 0 : index
      %58 = vector.load %arg5[%c0_44, %c0_45] : memref<8x1xf32, #tpu.memory_space<vmem>>, vector<8x1xf32>
      %59 = arith.select %56, %57, %58 : vector<8x1xf32>
      %c0_46 = arith.constant 0 : index
      %c0_47 = arith.constant 0 : index
      %60 = vector.load %arg8[%c0_46, %c0_47] : memref<8x1xf32, #tpu.memory_space<vmem>>, vector<8x1xf32>
      %c0_48 = arith.constant 0 : index
      %c0_49 = arith.constant 0 : index
      %61 = vector.load %arg7[%c0_48, %c0_49] : memref<8x1xf32, #tpu.memory_space<vmem>>, vector<8x1xf32>
      %62 = arith.select %56, %60, %61 : vector<8x1xf32>
      %c0_50 = arith.constant 0 : index
      %c0_51 = arith.constant 0 : index
      %63 = vector.load %arg9[%c0_50, %c0_51] : memref<8x1xf32, #tpu.memory_space<vmem>>, vector<8x1xf32>
      %64 = tpu.iota {dimensions = array<i32: 0>} : vector<8x1xi32>
      %c4_i32 = arith.constant 4 : i32
      %c0_i32_52 = arith.constant 0 : i32
      %65 = arith.cmpi eq, %c4_i32, %c0_i32_52 : i32
      %c1_i32 = arith.constant 1 : i32
      %66 = arith.select %65, %c1_i32, %c4_i32 : i32
      %67 = vector.broadcast %66 : i32 to vector<8x1xi32>
      %68 = arith.remsi %64, %67 : vector<8x1xi32>
      %c0_i32_53 = arith.constant 0 : i32
      %69 = vector.broadcast %c0_i32_53 : i32 to vector<8x1xi32>
      %70 = arith.cmpi ne, %68, %69 : vector<8x1xi32>
      %c0_i32_54 = arith.constant 0 : i32
      %71 = vector.broadcast %c0_i32_54 : i32 to vector<8x1xi32>
      %72 = arith.cmpi slt, %68, %71 : vector<8x1xi32>
      %c0_i32_55 = arith.constant 0 : i32
      %73 = arith.cmpi slt, %66, %c0_i32_55 : i32
      %74 = vector.broadcast %73 : i1 to vector<8x1xi1>
      %75 = vector.broadcast %74 : vector<8x1xi1> to vector<8x1xi1>
      %76 = arith.xori %72, %75 : vector<8x1xi1>
      %77 = arith.andi %76, %70 : vector<8x1xi1>
      %78 = vector.broadcast %66 : i32 to vector<8x1xi32>
      %79 = arith.addi %68, %78 : vector<8x1xi32>
      %80 = arith.select %77, %79, %68 : vector<8x1xi1>, vector<8x1xi32>
      %c1_i32_56 = arith.constant 1 : i32
      %81 = vector.broadcast %c1_i32_56 : i32 to vector<8x1xi32>
      %82 = arith.cmpi sge, %80, %81 : vector<8x1xi32>
      %cst_57 = arith.constant 0.000000e+00 : f32
      %83 = vector.broadcast %cst_57 : f32 to vector<8x1xf32>
      %84 = arith.cmpf ogt, %63, %83 : vector<8x1xf32>
      %cst_58 = arith.constant 0.000000e+00 : f32
      %85 = vector.broadcast %cst_58 : f32 to vector<8x1xf32>
      %86 = arith.cmpf ogt, %62, %85 : vector<8x1xf32>
      %87 = arith.ori %84, %86 : vector<8x1xi1>
      %88 = arith.andi %82, %87 : vector<8x1xi1>
      %cst_59 = arith.constant 2.000000e+00 : f32
      %89 = vector.broadcast %cst_59 : f32 to vector<8x1xf32>
      %90 = arith.mulf %89, %59 : vector<8x1xf32>
      %cst_60 = arith.constant 1.000000e+00 : f32
      %91 = vector.broadcast %cst_60 : f32 to vector<8x1xf32>
      %92 = arith.addf %90, %91 : vector<8x1xf32>
      %93 = arith.addf %62, %63 : vector<8x1xf32>
      %cst_61 = arith.constant 1.000000e+00 : f32
      %94 = vector.broadcast %cst_61 : f32 to vector<8x1xf32>
      %95 = arith.addf %93, %94 : vector<8x1xf32>
      %96 = arith.divf %92, %95 : vector<8x1xf32>
      %cst_62 = arith.constant 1.000000e+00 : f32
      %97 = vector.broadcast %cst_62 : f32 to vector<8x1xf32>
      %98 = arith.subf %97, %96 : vector<8x1xf32>
      %cst_63 = arith.constant 0.000000e+00 : f32
      %99 = vector.broadcast %cst_63 : f32 to vector<8x1xf32>
      %100 = arith.select %88, %98, %99 : vector<8x1xi1>, vector<8x1xf32>
      %101 = arith.extui %88 : vector<8x1xi1> to vector<8x1xi32>
      %102 = arith.sitofp %101 : vector<8x1xi32> to vector<8x1xf32>
      %103 = vector.shape_cast %102 : vector<8x1xf32> to vector<1x8x1xf32>
      %cst_64 = arith.constant dense<0.000000e+00> : vector<1xf32>
      %104 = vector.multi_reduction <add>, %103, %cst_64 [1, 2] : vector<1x8x1xf32> to vector<1xf32>
      %105 = vector.shape_cast %104 : vector<1xf32> to vector<1x1x1xf32>
      %106 = vector.extract %105[0, 0, 0] : f32 from vector<1x1x1xf32>
      %107 = vector.shape_cast %100 : vector<8x1xf32> to vector<1x8x1xf32>
      %cst_65 = arith.constant dense<0.000000e+00> : vector<1xf32>
      %108 = vector.multi_reduction <add>, %107, %cst_65 [1, 2] : vector<1x8x1xf32> to vector<1xf32>
      %109 = vector.shape_cast %108 : vector<1xf32> to vector<1x1x1xf32>
      %110 = vector.extract %109[0, 0, 0] : f32 from vector<1x1x1xf32>
      %cst_66 = arith.constant 0.000000e+00 : f32
      %111 = arith.cmpf ogt, %106, %cst_66 : f32
      %cst_67 = arith.constant 1.000000e+00 : f32
      %112 = arith.maximumf %106, %cst_67 : f32
      %113 = arith.divf %110, %112 : f32
      %cst_68 = arith.constant 0.000000e+00 : f32
      %114 = arith.select %111, %113, %cst_68 : f32
      %c0_69 = arith.constant 0 : index
      %c0_70 = arith.constant 0 : index
      %115 = memref.load %arg3[%c0_69, %c0_70] : memref<1x1xf32, #tpu.memory_space<smem>>
      memref.store %114, %arg3[%c0_69, %c0_70] : memref<1x1xf32, #tpu.memory_space<smem>>
    } else {
    }
    return
  }
  func.func @transform_0(%arg0: i32) -> (i32, i32) {
    %c0_i32 = arith.constant 0 : i32
    %c0_i32_0 = arith.constant 0 : i32
    return %c0_i32, %arg0 : i32, i32
  }
  func.func @transform_1(%arg0: i32) -> (i32, i32) {
    %c0_i32 = arith.constant 0 : i32
    %c0_i32_0 = arith.constant 0 : i32
    return %c0_i32, %arg0 : i32, i32
  }
  func.func @transform_2(%arg0: i32) -> (i32, i32) {
    %c0_i32 = arith.constant 0 : i32
    %c0_i32_0 = arith.constant 0 : i32
    %c0_i32_1 = arith.constant 0 : i32
    return %c0_i32, %c0_i32_0 : i32, i32
  }
}

</mosaic_0001>

<llo_original>
// kernel: tpu_custom_call.1
$region0: #{tpu_custom_call.1}
  #allocation0 [shape = 'u32[]', space=smem, size = 0x4, offset = 0x4, fixed_abs, tag = 'smem constant byte address 0x4 - core index']
  #allocation1 [shape = 'u32[144,128]{1,0:T(1,128)}', space=vmem, size = 0x12000, scoped, tag = 'internal scratch']
  #allocation2 [shape = 'f32[8,1]{1,0:T(8,128)}', space=vmem, size = 0x1000, scoped, tag = 'scratch operand']
  #allocation3 [shape = 'f32[8,1]{1,0:T(8,128)}', space=vmem, size = 0x1000, scoped, tag = 'scratch operand']
  #allocation4 [shape = 'f32[8,1]{1,0:T(8,128)}', space=vmem, size = 0x1000, scoped, tag = 'scratch operand']
  #allocation5 [shape = 'f32[8,1]{1,0:T(8,128)}', space=vmem, size = 0x1000, scoped, tag = 'scratch operand']
  #allocation6 [shape = 'f32[8,1]{1,0:T(8,128)}', space=vmem, size = 0x1000, scoped, tag = 'scratch operand']
  #allocation7 [shape = 'f32[8,1]{1,0:T(8,128)}', space=vmem, size = 0x1000, scoped, tag = 'scratch operand']
  %s0 = inlined_call_operand.hbm [shape: f32[8,256], index: 0, kind: input, shape index: {}]
  %s1 = inlined_call_operand.hbm [shape: bf16[8,256], index: 1, kind: input, shape index: {}]
  %s2 = inlined_call_operand.hbm [shape: f32[1,1], index: 2, kind: output, shape index: {}]
  %s3 = sld [smem:[#allocation0]]
  $region34: #{tpu_custom_call.1} parent=0
    _
  %s5 = ssub.s32 1, %s3
  %s6 = scalar_select 0, %s5, %s3
  $region1: #{tpu_custom_call.1} parent=0
    #allocation8 [shape = 'u8[8192]{0}', space=vmem, size = 0x2000, scoped, tag = 'input window, operand 0, single buffered']
    #allocation9 [shape = 's32[1]{0}', space=sflag, size = 0x4, scoped, tag = 'scoped memory for tpu_custom_call.1']
    #allocation10 [shape = 's32[1]{0}', space=sflag, size = 0x4, scoped, tag = 'scoped memory for tpu_custom_call.1']
    #allocation11 [shape = 'u8[4096]{0}', space=vmem, size = 0x1000, scoped, tag = 'input window, operand 1, single buffered']
    #allocation12 [shape = 's32[1]{0}', space=sflag, size = 0x4, scoped, tag = 'scoped memory for tpu_custom_call.1']
    #allocation13 [shape = 'u8[512]{0}', space=smem, size = 0x200, scoped, tag = 'output window, operand 0, single buffered']
    %7 = vsyncpa [#allocation9], 0
    %8 = vsyncpa [#allocation12], 0
    %9 = vsyncpa [#allocation10], 0
    // Predicated region
    $region2: #{tpu_custom_call.1} parent=1 // pred_check
      _
    $region3: #{tpu_custom_call.1} parent=1 // pred_check_branch
      %11 = sbr.rel (0) target = $region5
    $region4: #{tpu_custom_call.1} parent=1 // pred_region
      %s13 = ssub.s32 256, 256
      %14 = vsyncadd [#allocation9], %s13
      %s16 = sshll.u32 [#allocation8], 4
      %s17 = int_to_ptr.vmem [resolvable:$true] %s16
      %19 = dma.hbm_to_vmem [thread:$0]  %s0, 256, %s17, [#allocation9]
    $region5: #{tpu_custom_call.1} parent=1 // pred_fallthru
      _
    // Predicated region
    $region6: #{tpu_custom_call.1} parent=1 // pred_check
      _
    $region7: #{tpu_custom_call.1} parent=1 // pred_check_branch
      %21 = sbr.rel (0) target = $region9
    $region8: #{tpu_custom_call.1} parent=1 // pred_region
      %s23 = ssub.s32 128, 128
      %24 = vsyncadd [#allocation12], %s23
      %s26 = sshll.u32 [#allocation11], 4
      %s27 = int_to_ptr.vmem [resolvable:$true] %s26
      %29 = dma.hbm_to_vmem [thread:$0]  %s1, 128, %s27, [#allocation12]
    $region9: #{tpu_custom_call.1} parent=1 // pred_fallthru
      _
    // Predicated region
    $region10: #{tpu_custom_call.1} parent=1 // pred_check
      _
    $region11: #{tpu_custom_call.1} parent=1 // pred_check_branch
      %31 = sbr.rel (0) target = $region13
    $region12: #{tpu_custom_call.1} parent=1 // pred_region
      %32 = dma.done [#allocation9], 256
    $region13: #{tpu_custom_call.1} parent=1 // pred_fallthru
      _
    // Predicated region
    $region14: #{tpu_custom_call.1} parent=1 // pred_check
      _
    $region15: #{tpu_custom_call.1} parent=1 // pred_check_branch
      %34 = sbr.rel (0) target = $region17
    $region16: #{tpu_custom_call.1} parent=1 // pred_region
      %35 = dma.done [#allocation12], 128
    $region17: #{tpu_custom_call.1} parent=1 // pred_fallthru
      _
    %p36 = scmp.eq.s32.totalorder 0, 0
    // Predicated region
    $region18: #{tpu_custom_call.1} parent=1 // pred_check
      %p37 = pneg %p36
    $region19: #{tpu_custom_call.1} parent=1 // pred_check_branch
      %39 = sbr.rel (%p37) target = $region21
    $region20: #{tpu_custom_call.1} parent=1 // pred_region
      %vm40 = vcmask 7168
      %41 = vst.msk [vmem:[#allocation2] sm:$0xff] %vm40, 0.0
      %42 = vst.msk [vmem:[#allocation3] sm:$0xff] %vm40, 0.0
      %43 = vst.msk [vmem:[#allocation4] sm:$0xff] %vm40, 0.0
      %44 = vst.msk [vmem:[#allocation5] sm:$0xff] %vm40, 0.0
      %45 = vst.msk [vmem:[#allocation6] sm:$0xff] %vm40, 0.0
      %46 = vst.msk [vmem:[#allocation7] sm:$0xff] %vm40, 0.0
    $region21: #{tpu_custom_call.1} parent=1 // pred_fallthru
      _
    %v47 = vld [vmem:[#allocation8] sm:$0xff]
    %v48 = vld [vmem:[#allocation8 + $0x8] sm:$0xff]
    %v49 = vld [vmem:[#allocation11] sm:$0xff]
    %v50 = vunpack.c.l.bf16 %v49
    %v51 = vunpack.c.h.bf16 %v49
    %v52 = vxor.u32 %v47, 2147483648
    %v53 = vxor.u32 %v48, 2147483648
    %v54 = vmul.f32 %v52, 1.442695
    %v55 = vpow.pop %v54
    %v56 = vmul.f32 %v53, 1.442695
    %v57 = vpow.pop %v56
    %v58 = vadd.f32 %v55, 1.0
    %v59 = vadd.f32 %v57, 1.0
    %v60 = vrcp.pop %v58
    %v61 = vmul.f32 1.0, %v60
    %v62 = vrcp.pop %v59
    %v63 = vmul.f32 1.0, %v62
    %v64 = vld [vmem:[#allocation3] sm:$0xff]
    %v65 = vmul.f32 %v47, %v50
    %v66 = vmul.f32 %v48, %v51
    %v67 = vadd.f32 %v65, %v66
    %68 = vadd.xlane.f32.xlu0 %v67
    %v69 = vpop.xlane.xlu0 %68
    %v70 = vadd.f32 %v64, %v69
    %vm71 = vcmask 7168
    %72 = vst.msk [vmem:[#allocation3] sm:$0xff] %vm71, %v70
    %v73 = vld [vmem:[#allocation4] sm:$0xff]
    %v74 = vmul.f32 %v61, %v50
    %v75 = vmul.f32 %v63, %v51
    %v76 = vadd.f32 %v74, %v75
    %77 = vadd.xlane.f32.xlu0 %v76
    %v78 = vpop.xlane.xlu0 %77
    %v79 = vadd.f32 %v73, %v78
    %80 = vst.msk [vmem:[#allocation4] sm:$0xff] %vm71, %v79
    %v81 = vld [vmem:[#allocation5] sm:$0xff]
    %v82 = vadd.f32 %v47, %v48
    %83 = vadd.xlane.f32.xlu0 %v82
    %v84 = vpop.xlane.xlu0 %83
    %v85 = vadd.f32 %v81, %v84
    %86 = vst.msk [vmem:[#allocation5] sm:$0xff] %vm71, %v85
    %v87 = vld [vmem:[#allocation6] sm:$0xff]
    %v88 = vadd.f32 %v61, %v63
    %89 = vadd.xlane.f32.xlu0 %v88
    %v90 = vpop.xlane.xlu0 %89
    %v91 = vadd.f32 %v87, %v90
    %92 = vst.msk [vmem:[#allocation6] sm:$0xff] %vm71, %v91
    %v93 = vld [vmem:[#allocation7] sm:$0xff]
    %v94 = vadd.f32 %v50, %v51
    %95 = vadd.xlane.f32.xlu0 %v94
    %v96 = vpop.xlane.xlu0 %95
    %v97 = vadd.f32 %v93, %v96
    %98 = vst.msk [vmem:[#allocation7] sm:$0xff] %vm71, %v97
    %v99 = vsub.f32 0.0, %v47
    %v100 = vsub.f32 0.0, %v48
    %v101 = vsub.f32 %v47, 1.0
    %v102 = vsub.f32 %v48, 1.0
    %v103 = vmax.f32 %v99, %v101
    %v104 = vmax.f32 %v100, %v102
    %v105 = vld [vmem:[#allocation2] sm:$0xff]
    %v106 = vmax.f32 %v103, %v104
    %107 = vmax.xlane.f32.xlu0 %v106
    %v108 = vpop.xlane.xlu0 %107
    %v109 = vmax.f32 %v105, %v108
    %110 = vst.msk [vmem:[#allocation2] sm:$0xff] %vm71, %v109
    // Predicated region
    $region22: #{tpu_custom_call.1} parent=1 // pred_check
      %p111 = pneg %p36
    $region23: #{tpu_custom_call.1} parent=1 // pred_check_branch
      %113 = sbr.rel (%p111) target = $region25
    $region24: #{tpu_custom_call.1} parent=1 // pred_region
      %v114 = vld [vmem:[#allocation2] sm:$0xff]
      %v115 = vsel %vm71, %v114, -inf
      %116 = vmax.xlane.f32.xlu0 %v115
      %v117 = vpop.xlane.xlu0 %116
      %v118 = vrot.slane %v117, 4
      %v119 = vmax.f32 %v117, %v118
      %v120 = vrot.slane %v119, 2
      %v121 = vmax.f32 %v119, %v120
      %v122 = vrot.slane %v121, 1
      %v123 = vmax.f32 %v121, %v122
      %s124 = vtos %v123
      %p125 = scmp.gt.f32.partialorder %s124, 0.0
      %v126 = vld [vmem:[#allocation4] sm:$0xff]
      %v127 = vld [vmem:[#allocation3] sm:$0xff]
      %s128 = scalar_select %p125, 1, 0
      %v129 = vstv %s128
      %vm130 = vcmp.eq.s32.totalorder %v129, 1
      %v131 = vsel %vm130, %v126, %v127
      %v132 = vld [vmem:[#allocation6] sm:$0xff]
      %v133 = vld [vmem:[#allocation5] sm:$0xff]
      %v134 = vsel %vm130, %v132, %v133
      %v135 = vld [vmem:[#allocation7] sm:$0xff]
      %v136 = vlaneseq
      %v137 = vshrl.u32 %v136, 7
      %vm138 = vcmp.lt.s32.totalorder %v137, 0
      %v139 = vsub.s32 0, %v137
      %v140 = vsel %vm138, %v139, %v137
      %v141 = vshrl.u32 %v140, 2
      %v142 = vand.u32 %v140, 3
      %v143 = vsub.s32 0, %v142
      %v144 = vsel %vm138, %v143, %v142
      %vm145 = vcmp.ne.s32.totalorder %v144, 0
      %vm146 = vcmp.lt.s32.totalorder %v144, 0
      %vm147 = vmand %vm146, %vm145
      %v148 = vadd.s32 %v144, 4
      %v149 = vsel %vm147, %v148, %v144
      %vm150 = vcmp.ge.s32.totalorder %v149, 1
      %vm151 = vcmp.gt.f32.partialorder %v135, 0.0
      %vm152 = vcmp.gt.f32.partialorder %v134, 0.0
      %vm153 = vmor %vm151, %vm152
      %vm154 = vmand %vm150, %vm153
      %v155 = vmul.f32 %v131, 2.0
      %v156 = vadd.f32 %v155, 1.0
      %v157 = vadd.f32 %v134, %v135
      %v158 = vadd.f32 %v157, 1.0
      %v159 = vrcp.pop %v158
      %v160 = vmul.f32 %v156, %v159
      %v161 = vsub.f32 1.0, %v160
      %v162 = vsel %vm154, %v161, 0.0
      %v163 = vsel %vm154, 1, 0
      %v164 = vcvt.s32.f32 %v163
      %v165 = vsel %vm71, %v164, 0.0
      %166 = vadd.xlane.f32.xlu0 %v165
      %v167 = vpop.xlane.xlu0 %166
      %v168 = vrot.slane %v167, 4
      %v169 = vadd.f32 %v167, %v168
      %v170 = vrot.slane %v169, 2
      %v171 = vadd.f32 %v169, %v170
      %v172 = vrot.slane %v171, 1
      %v173 = vadd.f32 %v171, %v172
      %s174 = vtos %v173
      %v175 = vsel %vm71, %v162, 0.0
      %176 = vadd.xlane.f32.xlu0 %v175
      %v177 = vpop.xlane.xlu0 %176
      %v178 = vrot.slane %v177, 4
      %v179 = vadd.f32 %v177, %v178
      %v180 = vrot.slane %v179, 2
      %v181 = vadd.f32 %v179, %v180
      %v182 = vrot.slane %v181, 1
      %v183 = vadd.f32 %v181, %v182
      %s184 = vtos %v183
      %p185 = scmp.gt.f32.partialorder %s174, 0.0
      %s186 = smax.f32 %s174, 1.0
      %v187 = vstv %s186
      %v188 = vrcp.pop %v187
      %s189 = vtos %v188
      %s190 = smul.f32 %s184, %s189
      %s191 = scalar_select %p185, %s190, 0.0
      %s192 = scalar_lea.smem [#allocation13], 0
      %193 = sst [smem:[%s192]] %s191
    $region25: #{tpu_custom_call.1} parent=1 // pred_fallthru
      _
    // Predicated region
    $region26: #{tpu_custom_call.1} parent=1 // pred_check
      _
    $region27: #{tpu_custom_call.1} parent=1 // pred_check_branch
      %195 = sbr.rel (0) target = $region29
    $region28: #{tpu_custom_call.1} parent=1 // pred_region
      %s197 = ssub.s32 16, 16
      %198 = vsyncadd [#allocation10], %s197
      %201 = dma.smem_to_hbm [#allocation13], 16, %s2, [#allocation10]
    $region29: #{tpu_custom_call.1} parent=1 // pred_fallthru
      _
    // Predicated region
    $region30: #{tpu_custom_call.1} parent=1 // pred_check
      _
    $region31: #{tpu_custom_call.1} parent=1 // pred_check_branch
      %203 = sbr.rel (0) target = $region33
    $region32: #{tpu_custom_call.1} parent=1 // pred_region
      %204 = dma.done [#allocation10], 16
    $region33: #{tpu_custom_call.1} parent=1 // pred_fallthru
      _
    %205 = sfence
    %206 = vsyncpa [#allocation9], 1
    %207 = vsyncpa [#allocation12], 1
    %208 = vsyncpa [#allocation10], 1

</llo_original>
